<compile_context>
chip_gen: v7x
topology: tpu7x:2x2x1
jax: 0.10.0
libtpu: 0.0.40
codegen_flags: <defaults>
</compile_context>

<pallas_src>
import jax
import jax.numpy as jnp
from jax import lax
from jax.experimental import pallas as pl
from jax.experimental.pallas import tpu as pltpu

_MIB = 1024 * 1024


def _vmem_budget_and_limit():
    """Generation-aware (input-buffer budget, vmem_limit_bytes)."""
    vmem_cap = 128 * _MIB
    try:
        info = pltpu.get_tpu_info()
        cap = getattr(info, "vmem_capacity_bytes", None)
        if cap:
            vmem_cap = int(cap)
    except Exception:
        pass
    if vmem_cap >= 96 * _MIB:            # v5e / v6e: 128 MiB physical VMEM
        return 64 * _MIB, 100 * _MIB
    return 36 * _MIB, 48 * _MIB          # v7x: 64 MiB physical VMEM


def _round_up(x, m):
    return -(-x // m) * m


def _pick_tiles(S, C, itemsize, budget):
    """Pick (TC, TS): channel tile (sublane axis) and spatial tile (lane axis).

    Budget model (bytes):
      2 inputs * 2 pipeline buffers * (TC padded to sublane pack) * TS * itemsize
      + 3 f32 accumulators of shape (1, TS), sublane-padded to 8 rows.
    """
    pack = max(1, 32 // itemsize)          # sublane pack: 8 f32, 16 bf16, 32 int8
    c_pad = _round_up(C, pack)
    acc_bytes_per_lane = 3 * 8 * 4         # 3 accumulators, 8 padded sublanes, f32

    # ---- Preferred: no channel tiling (TC == C). ----
    max_ts = budget // (4 * c_pad * itemsize + acc_bytes_per_lane)
    if max_ts >= min(S, 512):
        # Target ~4 MiB of input traffic per grid step (far above the ~0.35 us
        # per-step overhead, well inside the VMEM budget).
        cap = max(512, ((2 * _MIB) // (c_pad * itemsize)) // 128 * 128)
        ts = min(max_ts, cap)
        if S <= ts:
            return C, S                    # single full-extent spatial block
        ts = (ts // 128) * 128
        # Prefer a 128-multiple that divides S (no tail tile -> no lane mask),
        # as long as it doesn't shrink the tile by more than 2x.
        for cand in range(ts, max(ts // 2, 128) - 1, -128):
            if S % cand == 0:
                return C, cand
        return C, ts

    # ---- Large C: also tile the channel axis (adds a reduction grid axis). ----
    ts = min(S, 512)                       # full extent or a 128-multiple
    tc_pad_max = (budget - acc_bytes_per_lane * ts) // (4 * ts * itemsize)
    tc = max(pack, (tc_pad_max // pack) * pack)
    return tc, ts


def _make_single_pass_kernel(eps2, S, TS, need_s_mask):
    """Grid = (N, num_s); full channel extent per step, no cross-step state."""

    def kernel(p_ref, t_ref, o_ref):
        p = p_ref[0].astype(jnp.float32)                    # (C, TS)
        t = t_ref[0].astype(jnp.float32)
        dot = jnp.sum(p * t, axis=0, keepdims=True)         # (1, TS) sublane reduce
        pp = jnp.sum(p * p, axis=0, keepdims=True)
        tt = jnp.sum(t * t, axis=0, keepdims=True)
        # PyTorch: cos = dot / (max(||p||, eps) * max(||t||, eps)),
        # fused as rsqrt(max(||.||^2, eps^2)) on the EUP.
        cos = (dot
               * lax.rsqrt(jnp.maximum(pp, eps2))
               * lax.rsqrt(jnp.maximum(tt, eps2)))
        loss = 1.0 - cos                                     # (1, TS)
        if need_s_mask:
            # zero padded lanes of the tail tile (padding would add loss = 1)
            col = pl.program_id(1) * TS + lax.broadcasted_iota(jnp.int32, (1, TS), 1)
            loss = jnp.where(col < S, loss, 0.0)
        # one tiny cross-lane reduce per tile; lane-dense (8, 128) store
        o_ref[...] = jnp.broadcast_to(jnp.sum(loss), o_ref.shape)

    return kernel


def _make_channel_tiled_kernel(eps2, S, TS, C, TC, need_s_mask, need_c_mask):
    """Grid = (N, num_s, num_c); channel axis is an 'arbitrary' reduction axis."""

    def kernel(p_ref, t_ref, o_ref, dot_acc, pp_acc, tt_acc):
        c = pl.program_id(2)

        @pl.when(c == 0)
        def _():
            dot_acc[...] = jnp.zeros_like(dot_acc)
            pp_acc[...] = jnp.zeros_like(pp_acc)
            tt_acc[...] = jnp.zeros_like(tt_acc)

        p = p_ref[0].astype(jnp.float32)                    # (TC, TS)
        t = t_ref[0].astype(jnp.float32)
        if need_c_mask:
            # zero padded channel rows of the tail channel tile
            row = c * TC + lax.broadcasted_iota(jnp.int32, (TC, TS), 0)
            valid = row < C
            p = jnp.where(valid, p, 0.0)
            t = jnp.where(valid, t, 0.0)
        dot_acc[...] += jnp.sum(p * t, axis=0, keepdims=True)
        pp_acc[...] += jnp.sum(p * p, axis=0, keepdims=True)
        tt_acc[...] += jnp.sum(t * t, axis=0, keepdims=True)

        @pl.when(c == pl.num_programs(2) - 1)
        def _():
            cos = (dot_acc[...]
                   * lax.rsqrt(jnp.maximum(pp_acc[...], eps2))
                   * lax.rsqrt(jnp.maximum(tt_acc[...], eps2)))
            loss = 1.0 - cos
            if need_s_mask:
                col = pl.program_id(1) * TS + lax.broadcasted_iota(
                    jnp.int32, (1, TS), 1)
                loss = jnp.where(col < S, loss, 0.0)
            o_ref[...] = jnp.broadcast_to(jnp.sum(loss), o_ref.shape)

    return kernel


def cosine_similarity_loss(y_pred, y_true, reduction="mean", eps=1e-8):
    """Pallas TPU: reduce(1 - F.cosine_similarity(y_pred, y_true, dim=1, eps))."""
    assert y_pred.shape == y_true.shape
    assert reduction in ("mean", "sum")
    assert y_pred.ndim >= 2, "expects (N, C, ...) input, reduction over dim=1"

    N, C = int(y_pred.shape[0]), int(y_pred.shape[1])
    S = 1
    for d in y_pred.shape[2:]:
        S *= int(d)

    p = y_pred.reshape(N, C, S)
    t = y_true.reshape(N, C, S)

    itemsize = jnp.dtype(y_pred.dtype).itemsize
    budget, vmem_limit = _vmem_budget_and_limit()
    TC, TS = _pick_tiles(S, C, itemsize, budget)
    num_s = pl.cdiv(S, TS)
    num_c = pl.cdiv(C, TC)
    need_s_mask = (S % TS) != 0
    need_c_mask = (C % TC) != 0
    eps2 = float(eps) * float(eps)

    # Lane-dense partial-sum output: one (8, 128)-broadcast scalar per (n, s).
    out_shape = jax.ShapeDtypeStruct((N, num_s, 8, 128), jnp.float32)

    if num_c == 1:
        kernel = _make_single_pass_kernel(eps2, S, TS, need_s_mask)
        grid_spec = pltpu.PrefetchScalarGridSpec(
            num_scalar_prefetch=0,
            grid=(N, num_s),
            in_specs=[
                pl.BlockSpec((1, C, TS), lambda n, s: (n, 0, s)),
                pl.BlockSpec((1, C, TS), lambda n, s: (n, 0, s)),
            ],
            out_specs=pl.BlockSpec((1, 1, 8, 128), lambda n, s: (n, s, 0, 0)),
        )
        dim_sem = ("parallel", "parallel")
    else:
        kernel = _make_channel_tiled_kernel(
            eps2, S, TS, C, TC, need_s_mask, need_c_mask)
        grid_spec = pltpu.PrefetchScalarGridSpec(
            num_scalar_prefetch=0,
            grid=(N, num_s, num_c),
            in_specs=[
                pl.BlockSpec((1, TC, TS), lambda n, s, c: (n, c, s)),
                pl.BlockSpec((1, TC, TS), lambda n, s, c: (n, c, s)),
            ],
            out_specs=pl.BlockSpec((1, 1, 8, 128), lambda n, s, c: (n, s, 0, 0)),
            scratch_shapes=[
                pltpu.VMEM((1, TS), jnp.float32),
                pltpu.VMEM((1, TS), jnp.float32),
                pltpu.VMEM((1, TS), jnp.float32),
            ],
        )
        dim_sem = ("parallel", "parallel", "arbitrary")

    partials = pl.pallas_call(
        kernel,
        out_shape=out_shape,
        grid_spec=grid_spec,
        compiler_params=pltpu.CompilerParams(
            dimension_semantics=dim_sem,
            vmem_limit_bytes=vmem_limit,
        ),
    )(p, t)

    # Tiny final reduction in JAX over the per-(n, s-tile) partial sums.
    loss_sum = jnp.sum(partials[:, :, 0, 0])
    if reduction == "mean":
        return loss_sum / jnp.float32(N * S)
    return loss_sum


def _reference(y_pred, y_true, eps=1e-8):
    # matches torch.nn.functional.cosine_similarity (per-norm eps clamp)
    p = y_pred.astype(jnp.float32)
    t = y_true.astype(jnp.float32)
    dot = jnp.sum(p * t, axis=1)
    np_ = jnp.sqrt(jnp.sum(p * p, axis=1))
    nt_ = jnp.sqrt(jnp.sum(t * t, axis=1))
    cos = dot / (jnp.maximum(np_, eps) * jnp.maximum(nt_, eps))
    return jnp.mean(1.0 - cos)


if __name__ == "__main__":
    key = jax.random.PRNGKey(0)
    k1, k2 = jax.random.split(key)
    # NCHW inputs, consistent with the PyTorch module (dim=1 -> channels)
    y_pred = jax.random.normal(k1, (2, 4, 16, 16), dtype=jnp.float32)
    y_true = jax.random.normal(k2, (2, 4, 16, 16), dtype=jnp.float32)

    loss = cosine_similarity_loss(y_pred, y_true, reduction="mean", eps=1e-8)
    jax.block_until_ready(loss)
    ref = _reference(y_pred, y_true)
    assert jnp.allclose(loss, ref, atol=2e-5, rtol=1e-5), (loss, ref)

    # also exercise the native-dtype (bf16) path
    yp16 = y_pred.astype(jnp.bfloat16)
    yt16 = y_true.astype(jnp.bfloat16)
    loss16 = cosine_similarity_loss(yp16, yt16, reduction="mean", eps=1e-8)
    jax.block_until_ready(loss16)
    ref16 = _reference(yp16, yt16)
    assert jnp.allclose(loss16, ref16, atol=1e-3, rtol=1e-3), (loss16, ref16)

    print("KERNEL_OK")
</pallas_src>

<mosaic_0001>
module attributes {stable_mosaic.version = 11 : i64} {
  func.func @kernel(%arg0: i32, %arg1: i32, %arg2: memref<1x4x256xf32, #tpu.memory_space<vmem>>, %arg3: memref<1x4x256xf32, #tpu.memory_space<vmem>>, %arg4: memref<1x1x8x128xf32, #tpu.memory_space<vmem>>) attributes {dimension_semantics = [#tpu.dimension_semantics<parallel>, #tpu.dimension_semantics<parallel>], iteration_bounds = array<i64: 2, 1>, scalar_prefetch = 0 : i64, scratch_operands = 0 : i64, tpu.core_type = #tpu.core_type<tc>, window_params = [{transform_indices = @transform_0, window_bounds = array<i64: 1, 4, 256>}, {transform_indices = @transform_1, window_bounds = array<i64: 1, 4, 256>}, {transform_indices = @transform_2, window_bounds = array<i64: 1, 1, 8, 128>}]} {
    %c0 = arith.constant 0 : index
    %c0_0 = arith.constant 0 : index
    %c0_1 = arith.constant 0 : index
    %0 = vector.load %arg2[%c0, %c0_0, %c0_1] : memref<1x4x256xf32, #tpu.memory_space<vmem>>, vector<1x4x256xf32>
    %1 = vector.shape_cast %0 : vector<1x4x256xf32> to vector<4x256xf32>
    %c0_2 = arith.constant 0 : index
    %c0_3 = arith.constant 0 : index
    %c0_4 = arith.constant 0 : index
    %2 = vector.load %arg3[%c0_2, %c0_3, %c0_4] : memref<1x4x256xf32, #tpu.memory_space<vmem>>, vector<1x4x256xf32>
    %3 = vector.shape_cast %2 : vector<1x4x256xf32> to vector<4x256xf32>
    %4 = arith.mulf %1, %3 : vector<4x256xf32>
    %cst = arith.constant dense<0.000000e+00> : vector<256xf32>
    %5 = vector.multi_reduction <add>, %4, %cst [0] : vector<4x256xf32> to vector<256xf32>
    %6 = vector.shape_cast %5 : vector<256xf32> to vector<1x256xf32>
    %7 = arith.mulf %1, %1 : vector<4x256xf32>
    %cst_5 = arith.constant dense<0.000000e+00> : vector<256xf32>
    %8 = vector.multi_reduction <add>, %7, %cst_5 [0] : vector<4x256xf32> to vector<256xf32>
    %9 = vector.shape_cast %8 : vector<256xf32> to vector<1x256xf32>
    %10 = arith.mulf %3, %3 : vector<4x256xf32>
    %cst_6 = arith.constant dense<0.000000e+00> : vector<256xf32>
    %11 = vector.multi_reduction <add>, %10, %cst_6 [0] : vector<4x256xf32> to vector<256xf32>
    %12 = vector.shape_cast %11 : vector<256xf32> to vector<1x256xf32>
    %cst_7 = arith.constant 1.000000e-16 : f32
    %13 = vector.broadcast %cst_7 : f32 to vector<1x256xf32>
    %14 = arith.maximumf %9, %13 : vector<1x256xf32>
    %15 = math.rsqrt %14 : vector<1x256xf32>
    %16 = arith.mulf %6, %15 : vector<1x256xf32>
    %cst_8 = arith.constant 1.000000e-16 : f32
    %17 = vector.broadcast %cst_8 : f32 to vector<1x256xf32>
    %18 = arith.maximumf %12, %17 : vector<1x256xf32>
    %19 = math.rsqrt %18 : vector<1x256xf32>
    %20 = arith.mulf %16, %19 : vector<1x256xf32>
    %cst_9 = arith.constant 1.000000e+00 : f32
    %21 = vector.broadcast %cst_9 : f32 to vector<1x256xf32>
    %22 = arith.subf %21, %20 : vector<1x256xf32>
    %23 = vector.shape_cast %22 : vector<1x256xf32> to vector<1x1x256xf32>
    %cst_10 = arith.constant dense<0.000000e+00> : vector<1xf32>
    %24 = vector.multi_reduction <add>, %23, %cst_10 [1, 2] : vector<1x1x256xf32> to vector<1xf32>
    %25 = vector.shape_cast %24 : vector<1xf32> to vector<1x1x1xf32>
    %26 = vector.extract %25[0, 0, 0] : f32 from vector<1x1x1xf32>
    %27 = vector.broadcast %26 : f32 to vector<1x1x8x128xf32>
    %c0_11 = arith.constant 0 : index
    %c0_12 = arith.constant 0 : index
    %c0_13 = arith.constant 0 : index
    %c0_14 = arith.constant 0 : index
    %28 = vector.load %arg4[%c0_11, %c0_12, %c0_13, %c0_14] : memref<1x1x8x128xf32, #tpu.memory_space<vmem>>, vector<1x1x8x128xf32>
    tpu.vector_store %arg4[%c0_11, %c0_12, %c0_13, %c0_14], %27 {strides = array<i32>} : memref<1x1x8x128xf32, #tpu.memory_space<vmem>>, vector<1x1x8x128xf32>,
    return
  }
  func.func @transform_0(%arg0: i32, %arg1: i32) -> (i32, i32, i32) {
    %c0_i32 = arith.constant 0 : i32
    %c0_i32_0 = arith.constant 0 : i32
    return %arg0, %c0_i32, %arg1 : i32, i32, i32
  }
  func.func @transform_1(%arg0: i32, %arg1: i32) -> (i32, i32, i32) {
    %c0_i32 = arith.constant 0 : i32
    %c0_i32_0 = arith.constant 0 : i32
    return %arg0, %c0_i32, %arg1 : i32, i32, i32
  }
  func.func @transform_2(%arg0: i32, %arg1: i32) -> (i32, i32, i32, i32) {
    %c0_i32 = arith.constant 0 : i32
    %c0_i32_0 = arith.constant 0 : i32
    %c0_i32_1 = arith.constant 0 : i32
    return %arg0, %arg1, %c0_i32, %c0_i32_0 : i32, i32, i32, i32
  }
}

</mosaic_0001>

<llo_original>
// kernel: tpu_custom_call.1
$region0: #{tpu_custom_call.1}
  #allocation0 [shape = 'u32[]', space=smem, size = 0x4, offset = 0x4, fixed_abs, tag = 'smem constant byte address 0x4 - core index']
  #allocation1 [shape = 'u32[144,128]{1,0:T(1,128)}', space=vmem, size = 0x12000, scoped, tag = 'internal scratch']
  %s0 = inlined_call_operand.hbm [shape: f32[2,4,256], index: 0, kind: input, shape index: {}]
  %s1 = inlined_call_operand.hbm [shape: f32[2,4,256], index: 1, kind: input, shape index: {}]
  %s2 = inlined_call_operand.hbm [shape: f32[2,1,8,128], index: 2, kind: output, shape index: {}]
  %s3 = sld [smem:[#allocation0]]
  $region49: #{tpu_custom_call.1} parent=0
    _
  %s5 = ssub.s32 1, %s3
  %s6 = scalar_select 0, %s5, %s3
  $region1: #{tpu_custom_call.1} parent=0
    #allocation2 [shape = 'u8[8192]{0}', space=vmem, size = 0x2000, scoped, tag = 'input window, operand 0']
    #allocation3 [shape = 's32[2]{0}', space=sflag, size = 0x8, scoped, tag = 'scoped memory for tpu_custom_call.1']
    #allocation4 [shape = 's32[2]{0}', space=sflag, size = 0x8, scoped, tag = 'scoped memory for tpu_custom_call.1']
    #allocation5 [shape = 'u8[8192]{0}', space=vmem, size = 0x2000, scoped, tag = 'input window, operand 1']
    #allocation6 [shape = 's32[2]{0}', space=sflag, size = 0x8, scoped, tag = 'scoped memory for tpu_custom_call.1']
    #allocation7 [shape = 'u8[8192]{0}', space=vmem, size = 0x2000, scoped, tag = 'output window, operand 0']
    %7 = vsyncpa [#allocation3], 0
    %s8 = scalar_lea.sflag [#allocation3], 1
    %9 = vsyncpa %s8, 0
    %10 = vsyncpa [#allocation6], 0
    %s11 = scalar_lea.sflag [#allocation6], 1
    %12 = vsyncpa %s11, 0
    %13 = vsyncpa [#allocation4], 0
    %s14 = scalar_lea.sflag [#allocation4], 1
    %15 = vsyncpa %s14, 0
    loop: start=0, step=1, limit=4
    $region2: #{tpu_custom_call.1} parent=1 // loop_pre_header
      _
    $region3: #{tpu_custom_call.1} parent=1 // loop_header
      %s17 = sphi 0, %s21
      %p18 = scmp.ge.s32.totalorder %s17, 4
      %s24 = sphi 0, %s36
      %s25 = sphi 0, %s32
      %s26 = sphi 0, %s24
      %s27 = sphi 0, %s25
      %s28 = sphi 0, %s26
      %s29 = sphi 0, %s27
      %s41 = sphi 0, %s43
      %s44 = sphi 0, %s41
      %s45 = sphi 0, %s44
      %s61 = sphi 0, %s45
      %s69 = sphi 0, %s71
      %s72 = sphi 0, %s69
      %s73 = sphi 0, %s72
      %s89 = sphi 0, %s73
      %s97 = sphi 0, %s99
      %s100 = sphi 0, %s97
      %s101 = sphi 0, %s100
      %s117 = sphi 0, %s101
    $region4: #{tpu_custom_call.1} parent=1 // loop_header_branch
      %20 = sbr.rel (%p18) target = $region8
    $region5: #{tpu_custom_call.1} parent=1 // loop_body
      %s22 = ssub.s32 %s17, 1
      %s23 = ssub.s32 %s17, 2
      %s30 = sadd.s32 1, %s25
      %p31 = scmp.ge.s32.totalorder %s30, 1
      %s32 = scalar_select %p31, 0, %s30
      %s33 = sadd.s32 1, %s24
      %s34 = scalar_select %p31, %s33, %s24
      %p35 = scmp.ge.s32.totalorder %s34, 2
      %s36 = scalar_select %p35, 0, %s34
      %s37 = ssub.s32 %s24, %s36
      %s38 = ssub.s32 %s25, %s32
      %s39 = sor.u32 %s37, %s38
      %p40 = scmp.eq.s32.totalorder %s39, 0
      %s42 = sadd.s32 %s41, 1
      %s43 = scalar_select %p40, %s41, %s42
      %p46 = pneg %p40
      %p47 = scmp.eq.s32.totalorder %s17, 1
      %p48 = por %p46, %p47
      %p49 = scmp.ne.s32.totalorder %s41, %s44
      %p50 = scmp.eq.s32.totalorder %s17, 0
      %p51 = por %p49, %p50
      %p52 = scmp.ne.s32.totalorder %s41, %s44
      %p53 = scmp.eq.s32.totalorder %s22, 1
      %p54 = por %p52, %p53
      %p55 = scmp.ne.s32.totalorder %s44, %s45
      %p56 = scmp.eq.s32.totalorder %s22, 0
      %p57 = por %p55, %p56
      %p58 = scmp.ne.s32.totalorder %s44, %s45
      %p59 = scmp.eq.s32.totalorder %s23, 1
      %p60 = por %p58, %p59
      %p62 = scmp.ne.s32.totalorder %s45, %s61
      %p63 = scmp.eq.s32.totalorder %s23, 0
      %p64 = por %p62, %p63
      %s65 = ssub.s32 %s24, %s36
      %s66 = ssub.s32 %s25, %s32
      %s67 = sor.u32 %s65, %s66
      %p68 = scmp.eq.s32.totalorder %s67, 0
      %s70 = sadd.s32 %s69, 1
      %s71 = scalar_select %p68, %s69, %s70
      %p74 = pneg %p68
      %p75 = scmp.eq.s32.totalorder %s17, 1
      %p76 = por %p74, %p75
      %p77 = scmp.ne.s32.totalorder %s69, %s72
      %p78 = scmp.eq.s32.totalorder %s17, 0
      %p79 = por %p77, %p78
      %p80 = scmp.ne.s32.totalorder %s69, %s72
      %p81 = scmp.eq.s32.totalorder %s22, 1
      %p82 = por %p80, %p81
      %p83 = scmp.ne.s32.totalorder %s72, %s73
      %p84 = scmp.eq.s32.totalorder %s22, 0
      %p85 = por %p83, %p84
      %p86 = scmp.ne.s32.totalorder %s72, %s73
      %p87 = scmp.eq.s32.totalorder %s23, 1
      %p88 = por %p86, %p87
      %p90 = scmp.ne.s32.totalorder %s73, %s89
      %p91 = scmp.eq.s32.totalorder %s23, 0
      %p92 = por %p90, %p91
      %s93 = ssub.s32 %s24, %s36
      %s94 = ssub.s32 %s25, %s32
      %s95 = sor.u32 %s93, %s94
      %p96 = scmp.eq.s32.totalorder %s95, 0
      %s98 = sadd.s32 %s97, 1
      %s99 = scalar_select %p96, %s97, %s98
      %p102 = pneg %p96
      %p103 = scmp.eq.s32.totalorder %s17, 1
      %p104 = por %p102, %p103
      %p105 = scmp.ne.s32.totalorder %s97, %s100
      %p106 = scmp.eq.s32.totalorder %s17, 0
      %p107 = por %p105, %p106
      %p108 = scmp.ne.s32.totalorder %s97, %s100
      %p109 = scmp.eq.s32.totalorder %s22, 1
      %p110 = por %p108, %p109
      %p111 = scmp.ne.s32.totalorder %s100, %s101
      %p112 = scmp.eq.s32.totalorder %s22, 0
      %p113 = por %p111, %p112
      %p114 = scmp.ne.s32.totalorder %s100, %s101
      %p115 = scmp.eq.s32.totalorder %s23, 1
      %p116 = por %p114, %p115
      %p118 = scmp.ne.s32.totalorder %s101, %s117
      %p119 = scmp.eq.s32.totalorder %s23, 0
      %p120 = por %p118, %p119
      %p121 = scmp.le.s32.totalorder 1, %s17
      %p122 = scmp.lt.s32.totalorder %s17, 3
      %p123 = pnand %p121, %p122
      %p124 = pneg %p123
      // Predicated region
      $region9: #{tpu_custom_call.1} parent=5 // pred_check
        _
      $region10: #{tpu_custom_call.1} parent=5 // pred_check_branch
        %126 = sbr.rel (%p123) target = $region12
      $region11: #{tpu_custom_call.1} parent=5 // pred_region
        %s127 = ssub.s32 %s17, 1
      $region12: #{tpu_custom_call.1} parent=5 // pred_fallthru
        _
      %p128 = scmp.lt.s32.totalorder %s17, 2
      // Predicated region
      $region13: #{tpu_custom_call.1} parent=5 // pred_check
        %p129 = pneg %p128
      $region14: #{tpu_custom_call.1} parent=5 // pred_check_branch
        %131 = sbr.rel (%p129) target = $region16
      $region15: #{tpu_custom_call.1} parent=5 // pred_region
        // Predicated region
        $region17: #{tpu_custom_call.1} parent=15 // pred_check
          %p132 = pneg %p51
        $region18: #{tpu_custom_call.1} parent=15 // pred_check_branch
          %134 = sbr.rel (%p132) target = $region20
        $region19: #{tpu_custom_call.1} parent=15 // pred_region
          %s135 = sand.u32 %s41, 1
          %s136 = scalar_lea.sflag [#allocation3], %s135
          %s137 = sand.u32 %s41, 1
          %s138 = smul.addr %s137, 8
          %s139 = scalar_lea.vmem [#allocation2], %s138
          %s140 = smul.u32 2, %s25
          %s142 = ssub.s32 128, 128
          %143 = vsyncadd %s136, %s142
          %s144 = smul.addr %s24, 2
          %s145 = sadd.s32 %s140, %s144
          %s146 = smul.addr %s145, 64
          %s147 = scalar_lea.hbm %s0, %s146
          %s149 = sshll.u32 %s139, 4
          %s150 = int_to_ptr.vmem [resolvable:$true] %s149
          %152 = dma.hbm_to_vmem [thread:$0]  %s147, 128, %s150, %s136
        $region20: #{tpu_custom_call.1} parent=15 // pred_fallthru
          _
        // Predicated region
        $region21: #{tpu_custom_call.1} parent=15 // pred_check
          %p153 = pneg %p79
        $region22: #{tpu_custom_call.1} parent=15 // pred_check_branch
          %155 = sbr.rel (%p153) target = $region24
        $region23: #{tpu_custom_call.1} parent=15 // pred_region
          %s156 = sand.u32 %s69, 1
          %s157 = scalar_lea.sflag [#allocation6], %s156
          %s158 = sand.u32 %s69, 1
          %s159 = smul.addr %s158, 8
          %s160 = scalar_lea.vmem [#allocation5], %s159
          %s161 = smul.u32 2, %s25
          %s163 = ssub.s32 128, 128
          %164 = vsyncadd %s157, %s163
          %s165 = smul.addr %s24, 2
          %s166 = sadd.s32 %s161, %s165
          %s167 = smul.addr %s166, 64
          %s168 = scalar_lea.hbm %s1, %s167
          %s170 = sshll.u32 %s160, 4
          %s171 = int_to_ptr.vmem [resolvable:$true] %s170
          %173 = dma.hbm_to_vmem [thread:$0]  %s168, 128, %s171, %s157
        $region24: #{tpu_custom_call.1} parent=15 // pred_fallthru
          _
      $region16: #{tpu_custom_call.1} parent=5 // pred_fallthru
        _
      %p174 = scmp.le.s32.totalorder 1, %s17
      %p175 = scmp.lt.s32.totalorder %s17, 3
      %p176 = pnand %p174, %p175
      %p177 = pneg %p176
      // Predicated region
      $region25: #{tpu_custom_call.1} parent=5 // pred_check
        _
      $region26: #{tpu_custom_call.1} parent=5 // pred_check_branch
        %179 = sbr.rel (%p176) target = $region28
      $region27: #{tpu_custom_call.1} parent=5 // pred_region
        %s180 = ssub.s32 %s17, 1
        %s181 = sand.u32 %s44, 1
        %s182 = scalar_lea.sflag [#allocation3], %s181
        %s183 = sand.u32 %s44, 1
        %s184 = smul.addr %s183, 8
        %s185 = scalar_lea.vmem [#allocation2], %s184
        // Predicated region
        $region29: #{tpu_custom_call.1} parent=27 // pred_check
          %p186 = pneg %p57
        $region30: #{tpu_custom_call.1} parent=27 // pred_check_branch
          %188 = sbr.rel (%p186) target = $region32
        $region31: #{tpu_custom_call.1} parent=27 // pred_region
          %189 = dma.done %s182, 128
        $region32: #{tpu_custom_call.1} parent=27 // pred_fallthru
          _
        %s190 = sand.u32 %s72, 1
        %s191 = scalar_lea.sflag [#allocation6], %s190
        %s192 = sand.u32 %s72, 1
        %s193 = smul.addr %s192, 8
        %s194 = scalar_lea.vmem [#allocation5], %s193
        // Predicated region
        $region33: #{tpu_custom_call.1} parent=27 // pred_check
          %p195 = pneg %p85
        $region34: #{tpu_custom_call.1} parent=27 // pred_check_branch
          %197 = sbr.rel (%p195) target = $region36
        $region35: #{tpu_custom_call.1} parent=27 // pred_region
          %198 = dma.done %s191, 128
        $region36: #{tpu_custom_call.1} parent=27 // pred_fallthru
          _
        %s199 = sand.u32 %s44, 1
        %s200 = scalar_lea.sflag [#allocation3], %s199
        %s201 = sand.u32 %s44, 1
        %s202 = smul.addr %s201, 8
        %s203 = scalar_lea.vmem [#allocation2], %s202
        %p204 = pneg %p57
        %p205 = pneg %p54
        %s206 = sand.u32 %s72, 1
        %s207 = scalar_lea.sflag [#allocation6], %s206
        %s208 = sand.u32 %s72, 1
        %s209 = smul.addr %s208, 8
        %s210 = scalar_lea.vmem [#allocation5], %s209
        %p211 = pneg %p85
        %p212 = pneg %p82
        %p213 = pneg %p113
        %p214 = pneg %p110
        %s215 = sand.u32 %s100, 1
        %s216 = scalar_lea.sflag [#allocation4], %s215
        %s217 = sand.u32 %s100, 1
        %s218 = smul.addr %s217, 8
        %s219 = scalar_lea.vmem [#allocation7], %s218
        %s220 = smul.u32 2, %s27
        %s221 = smul.u32 2, %s27
        %v222 = vld [vmem:[%s185] sm:$0xff]
        %v223 = vld [vmem:[%s194] sm:$0xff]
        %v224 = vmul.f32 %v222, %v223
        %v226 = vcombine.high %v224, %v224
        %vm228 = vcmask 1043456
        %v229 = vsel %vm228, %v224, 0.0
        %v230 = vrot.slane %v229, 4
        %v231 = vadd.f32 %v229, %v230
        %v232 = vrot.slane %v231, 2
        %v233 = vadd.f32 %v231, %v232
        %v234 = vrot.slane %v233, 1
        %v235 = vadd.f32 %v233, %v234
        %v236 = vsel %vm228, %v226, 0.0
        %v237 = vrot.slane %v236, 4
        %v238 = vadd.f32 %v236, %v237
        %v239 = vrot.slane %v238, 2
        %v240 = vadd.f32 %v238, %v239
        %v241 = vrot.slane %v240, 1
        %v242 = vadd.f32 %v240, %v241
        %v243 = vmul.f32 %v222, %v222
        %v245 = vcombine.high %v243, %v243
        %v247 = vsel %vm228, %v243, 0.0
        %v248 = vrot.slane %v247, 4
        %v249 = vadd.f32 %v247, %v248
        %v250 = vrot.slane %v249, 2
        %v251 = vadd.f32 %v249, %v250
        %v252 = vrot.slane %v251, 1
        %v253 = vadd.f32 %v251, %v252
        %v254 = vsel %vm228, %v245, 0.0
        %v255 = vrot.slane %v254, 4
        %v256 = vadd.f32 %v254, %v255
        %v257 = vrot.slane %v256, 2
        %v258 = vadd.f32 %v256, %v257
        %v259 = vrot.slane %v258, 1
        %v260 = vadd.f32 %v258, %v259
        %v261 = vmul.f32 %v223, %v223
        %v263 = vcombine.high %v261, %v261
        %v265 = vsel %vm228, %v261, 0.0
        %v266 = vrot.slane %v265, 4
        %v267 = vadd.f32 %v265, %v266
        %v268 = vrot.slane %v267, 2
        %v269 = vadd.f32 %v267, %v268
        %v270 = vrot.slane %v269, 1
        %v271 = vadd.f32 %v269, %v270
        %v272 = vsel %vm228, %v263, 0.0
        %v273 = vrot.slane %v272, 4
        %v274 = vadd.f32 %v272, %v273
        %v275 = vrot.slane %v274, 2
        %v276 = vadd.f32 %v274, %v275
        %v277 = vrot.slane %v276, 1
        %v278 = vadd.f32 %v276, %v277
        %v279 = vmax.f32 %v253, 1e-16
        %v280 = vmax.f32 %v260, 1e-16
        %v281 = vrsqrt.pop %v279
        %v282 = vrsqrt.pop %v280
        %v283 = vmul.f32 %v235, %v281
        %v284 = vmul.f32 %v242, %v282
        %v285 = vmax.f32 %v271, 1e-16
        %v286 = vmax.f32 %v278, 1e-16
        %v287 = vrsqrt.pop %v285
        %v288 = vrsqrt.pop %v286
        %v289 = vmul.f32 %v283, %v287
        %v290 = vmul.f32 %v284, %v288
        %v291 = vsub.f32 1.0, %v289
        %v292 = vsub.f32 1.0, %v290
        %vm293 = vcmask 1040384
        %v294 = vsel %vm293, %v291, 0.0
        %v295 = vsel %vm293, %v292, 0.0
        %v296 = vadd.f32 %v294, %v295
        %297 = vadd.xlane.f32.xlu0 %v296
        %v298 = vpop.xlane.xlu0 %297
        %v299 = vrot.slane %v298, 4
        %v300 = vadd.f32 %v298, %v299
        %v301 = vrot.slane %v300, 2
        %v302 = vadd.f32 %v300, %v301
        %v303 = vrot.slane %v302, 1
        %v304 = vadd.f32 %v302, %v303
        %s305 = vtos %v304
        %v306 = vstv %s305
        %307 = vst [vmem:[%s219] sm:$0xff] %v306
        %s308 = sand.u32 %s100, 1
        %s309 = scalar_lea.sflag [#allocation4], %s308
        %s310 = sand.u32 %s100, 1
        %s311 = smul.addr %s310, 8
        %s312 = scalar_lea.vmem [#allocation7], %s311
        // Predicated region
        $region37: #{tpu_custom_call.1} parent=27 // pred_check
          %p313 = pneg %p110
        $region38: #{tpu_custom_call.1} parent=27 // pred_check_branch
          %315 = sbr.rel (%p313) target = $region40
        $region39: #{tpu_custom_call.1} parent=27 // pred_region
          %s317 = ssub.s32 128, 128
          %318 = vsyncadd %s309, %s317
          %s319 = sadd.s32 %s27, %s26
          %s320 = smul.addr %s319, 128
          %s321 = scalar_lea.hbm %s2, %s320
          %s323 = sshll.u32 %s312, 4
          %s324 = int_to_ptr.vmem [resolvable:$true] %s323
          %326 = dma.vmem_to_hbm [thread:$0]  %s324, 128, %s321, %s309
        $region40: #{tpu_custom_call.1} parent=27 // pred_fallthru
          _
      $region28: #{tpu_custom_call.1} parent=5 // pred_fallthru
        _
      %p327 = scmp.le.s32.totalorder 2, %s17
      // Predicated region
      $region41: #{tpu_custom_call.1} parent=5 // pred_check
        %p328 = pneg %p327
      $region42: #{tpu_custom_call.1} parent=5 // pred_check_branch
        %330 = sbr.rel (%p328) target = $region44
      $region43: #{tpu_custom_call.1} parent=5 // pred_region
        %s331 = ssub.s32 %s17, 2
        // Predicated region
        $region45: #{tpu_custom_call.1} parent=43 // pred_check
          %p332 = pneg %p116
        $region46: #{tpu_custom_call.1} parent=43 // pred_check_branch
          %334 = sbr.rel (%p332) target = $region48
        $region47: #{tpu_custom_call.1} parent=43 // pred_region
          %s335 = sand.u32 %s101, 1
          %s336 = scalar_lea.sflag [#allocation4], %s335
          %s337 = sand.u32 %s101, 1
          %s338 = smul.addr %s337, 8
          %s339 = scalar_lea.vmem [#allocation7], %s338
          %340 = dma.done %s336, 128
        $region48: #{tpu_custom_call.1} parent=43 // pred_fallthru
          _
      $region44: #{tpu_custom_call.1} parent=5 // pred_fallthru
        _
    $region6: #{tpu_custom_call.1} parent=1 // loop_footer
      %s21 = sadd.s32 1, %s17
    $region7: #{tpu_custom_call.1} parent=1 // loop_footer_branch
      %16 = sbr.rel target = $region3
    $region8: #{tpu_custom_call.1} parent=1 // loop_exit
      _
    %341 = vsyncpa [#allocation3], 1
    %s342 = scalar_lea.sflag [#allocation3], 1
    %343 = vsyncpa %s342, 1
    %344 = vsyncpa [#allocation6], 1
    %s345 = scalar_lea.sflag [#allocation6], 1
    %346 = vsyncpa %s345, 1
    %347 = vsyncpa [#allocation4], 1
    %s348 = scalar_lea.sflag [#allocation4], 1
    %349 = vsyncpa %s348, 1

</llo_original>
